<compile_context>
chip_gen: v5e
topology: v5e:2x2
jax: 0.10.0
libtpu: 0.0.40
codegen_flags: <defaults>
</compile_context>

<pallas_src>
import functools

import jax
import jax.numpy as jnp
from jax.experimental import pallas as pl
from jax.experimental.pallas import tpu as pltpu


# -----------------------------------------------------------------------------
# Kernel
# -----------------------------------------------------------------------------
def _make_autoencoder_kernel(num_layers, activations):
    """Fused MLP-autoencoder kernel.

    Ref order: (x, w0, b0, w1, b1, ..., w_{L-1}, b_{L-1}, out).
    Weights are bf16 (in, out); biases are f32 (1, out).  The layer loop is a
    Python loop -> fully unrolled at trace time (a handful of MXU passes).
    """

    def kernel(*refs):
        x_ref = refs[0]
        out_ref = refs[-1]
        param_refs = refs[1:-1]

        h = x_ref[...].astype(jnp.float32)
        for i in range(num_layers):
            w = param_refs[2 * i][...]        # bf16 (in, out)
            b = param_refs[2 * i + 1][...]    # f32  (1, out)
            # bf16 operands on the MXU, f32 accumulation; elementwise stays f32.
            h = jnp.dot(h.astype(jnp.bfloat16), w,
                        preferred_element_type=jnp.float32) + b
            act = activations[i]
            if act == "relu":
                h = jnp.maximum(h, 0.0)
            elif act == "sigmoid":
                # exp -> EUP, approximate reciprocal -> EUP vrcp (otherwise
                # idle after the exp): the whole epilogue stays off the VALU.
                h = pl.reciprocal(1.0 + jnp.exp(-h), approx=True)
            # act == "none": final encoder Linear has no activation.
        out_ref[...] = h.astype(out_ref.dtype)

    return kernel


# -----------------------------------------------------------------------------
# Parameter construction (deterministic, mimics PyTorch nn.Linear init)
# -----------------------------------------------------------------------------
def _init_linear(key, in_features, out_features):
    """PyTorch default init: U(-1/sqrt(in), 1/sqrt(in)) for both W and b.

    The weight is stored pre-transposed as bf16 (in, out) and the bias as f32
    (1, out) so the kernel computes h @ w + b with no per-call layout glue.
    """
    k_w, k_b = jax.random.split(key)
    bound = 1.0 / (in_features ** 0.5)
    w_t = jax.random.uniform(k_w, (in_features, out_features), jnp.float32,
                             minval=-bound, maxval=bound)
    b = jax.random.uniform(k_b, (1, out_features), jnp.float32,
                           minval=-bound, maxval=bound)
    return w_t.astype(jnp.bfloat16), b


def build_autoencoder_params(key, input_size, latent_size, hidden_dims):
    """Replicates the Autoencoder.__init__ layer construction:
    encoder = input -> hidden... (ReLU each) -> latent (no activation);
    decoder = latent -> reversed(hidden)... (ReLU each) -> input, then Sigmoid.
    """
    layer_dims = []
    activations = []

    in_size = input_size
    for h in hidden_dims:
        layer_dims.append((in_size, h))
        activations.append("relu")
        in_size = h
    layer_dims.append((in_size, latent_size))
    activations.append("none")

    rev_hidden = list(reversed(hidden_dims))
    in_size = latent_size
    for h in rev_hidden:
        layer_dims.append((in_size, h))
        activations.append("relu")
        in_size = h
    layer_dims.append((in_size, input_size))
    activations.append("sigmoid")

    params = []
    keys = jax.random.split(key, len(layer_dims))
    for k, (fi, fo) in zip(keys, layer_dims):
        params.append(_init_linear(k, fi, fo))
    return params, activations


# -----------------------------------------------------------------------------
# VMEM accounting & tiling helpers
# -----------------------------------------------------------------------------
def _round_up(v, m):
    return (v + m - 1) // m * m


def _padded_bytes(shape, dtype):
    """Approximate VMEM tile footprint including (sublane, lane) padding."""
    itemsize = jnp.dtype(dtype).itemsize
    sub = 8 * (4 // itemsize) if itemsize in (1, 2, 4) else 8
    if len(shape) >= 2:
        lead = 1
        for s in shape[:-2]:
            lead *= int(s)
        n = lead * _round_up(int(shape[-2]), sub) * _round_up(int(shape[-1]), 128)
    else:
        n = _round_up(int(shape[0]) if shape else 1, 128)
    return n * itemsize


def _vmem_capacity_bytes():
    try:
        return int(pltpu.get_tpu_info().vmem_capacity_bytes)
    except Exception:
        return 64 << 20  # conservative: v7x per-TensorCore physical VMEM


def _footprint_bytes(params, tb, in_features, out_features, x_dtype, max_width):
    # Constant-index weight/bias inputs still get 2 pipeline buffers by default.
    resident = 2 * sum(_padded_bytes(w.shape, w.dtype) +
                       _padded_bytes(b.shape, b.dtype) for w, b in params)
    # Double-buffered x / out tiles.
    tiles = 2 * _padded_bytes((tb, in_features), x_dtype) \
        + 2 * _padded_bytes((tb, out_features), x_dtype)
    # f32 intermediates + bf16 dot-operand copy, rough upper bound.
    work = 4 * tb * _round_up(int(max_width), 128) * 4
    return resident + tiles + work


def _pick_batch_tile(batch, footprint_fn, budget):
    """Largest sublane-aligned batch tile that divides the batch, fits the
    VMEM budget, and (when the batch allows) keeps >=2 grid steps so v7x's two
    TensorCores are both used and x/out tiles actually pipeline."""
    for tb in (4096, 2048, 1024, 512, 256, 128, 64, 32, 16, 8):
        if tb > batch or batch % tb != 0:
            continue
        if batch >= 16 and batch // tb < 2:
            continue
        if footprint_fn(tb) > budget:
            continue
        return tb
    return batch  # tiny / non-divisible batch: one full block


# -----------------------------------------------------------------------------
# Wrapper
# -----------------------------------------------------------------------------
@functools.partial(jax.jit, static_argnames=("activations",))
def autoencoder_forward(x, params, activations):
    """x: (batch, input_size).  params: [(W_t bf16 (in,out), b f32 (1,out)), ...]."""
    activations = tuple(activations)
    num_layers = len(params)
    batch, in_features = x.shape
    out_features = params[-1][0].shape[1]
    max_width = max([in_features, out_features] + [w.shape[1] for w, _ in params])

    physical_vmem = _vmem_capacity_bytes()
    tile_budget = max(physical_vmem - (16 << 20), physical_vmem // 2)

    footprint_fn = lambda tb: _footprint_bytes(
        params, tb, in_features, out_features, x.dtype, max_width)
    tb = _pick_batch_tile(batch, footprint_fn, tile_budget)
    grid = (pl.cdiv(batch, tb),)

    kernel = _make_autoencoder_kernel(num_layers, activations)

    # x / out are tiled along the batch; weights & biases use a constant
    # index_map so they stay VMEM-resident across all grid iterations.
    in_specs = [pl.BlockSpec((tb, in_features), lambda i: (i, 0))]
    kernel_inputs = [x]
    for w_t, b in params:
        in_specs.append(pl.BlockSpec(w_t.shape, lambda i: (0, 0)))
        in_specs.append(pl.BlockSpec(b.shape, lambda i: (0, 0)))
        kernel_inputs.append(w_t)
        kernel_inputs.append(b)

    out_specs = pl.BlockSpec((tb, out_features), lambda i: (i, 0))
    out_shape = jax.ShapeDtypeStruct((batch, out_features), x.dtype)

    # Only raise the scoped-VMEM limit when the footprint exceeds the most
    # conservative generation default (16 MiB on v5e); cap below physical VMEM
    # so we never steal all the compiler's pipelining headroom.
    footprint = footprint_fn(tb)
    vmem_limit = None
    if int(footprint * 1.25) > (16 << 20):
        vmem_limit = min(max(int(footprint * 1.25), 32 << 20),
                         physical_vmem - (4 << 20))

    compiler_params = pltpu.CompilerParams(
        dimension_semantics=("parallel",),
        vmem_limit_bytes=vmem_limit,
    )

    # Advisory cost estimate so XLA can overlap this custom call.
    flops = 2 * batch * sum(int(w.shape[0]) * int(w.shape[1]) for w, _ in params)
    param_bytes = sum(w.size * w.dtype.itemsize + b.size * b.dtype.itemsize
                      for w, b in params)
    cost = pl.CostEstimate(
        flops=flops,
        transcendentals=2 * batch * out_features,      # exp + reciprocal
        bytes_accessed=(batch * in_features + batch * out_features)
        * x.dtype.itemsize + param_bytes,
    )

    return pl.pallas_call(
        kernel,
        grid=grid,
        out_shape=out_shape,
        in_specs=in_specs,
        out_specs=out_specs,
        compiler_params=compiler_params,
        cost_estimate=cost,
    )(*kernel_inputs)


# Pure-JAX reference mirroring the kernel's dtype policy (bf16 MXU operands,
# f32 accumulation, f32 elementwise) for a tight correctness check.
def autoencoder_reference(x, params, activations):
    h = x.astype(jnp.float32)
    for (w_t, b), act in zip(params, activations):
        h = jnp.dot(h.astype(jnp.bfloat16), w_t,
                    preferred_element_type=jnp.float32) + b
        if act == "relu":
            h = jnp.maximum(h, 0.0)
        elif act == "sigmoid":
            h = jax.nn.sigmoid(h)
    return h.astype(x.dtype)


# -----------------------------------------------------------------------------
# Main
# -----------------------------------------------------------------------------
if __name__ == "__main__":
    # Small but lane/sublane-aligned shapes: batch is a multiple of 8 and big
    # enough that the grid has >=2 steps (exercises pipelining / megacore
    # sharding); input_size is a multiple of the 128-lane vreg width so the
    # output store is a full-width vst rather than a masked partial store.
    batch = 256
    input_size = 128
    latent_size = 16
    hidden_dims = [64, 32]

    key = jax.random.PRNGKey(0)
    k_params, k_x = jax.random.split(key)

    params, activations = build_autoencoder_params(
        k_params, input_size, latent_size, hidden_dims)

    x = jax.random.uniform(k_x, (batch, input_size), jnp.float32)

    out = autoencoder_forward(x, params, tuple(activations))
    out = jax.block_until_ready(out)

    ref = autoencoder_reference(x, params, activations)
    assert out.shape == (batch, input_size), out.shape
    # Tolerance absorbs the approx-EUP reciprocal in the sigmoid epilogue.
    assert jnp.allclose(out, ref, atol=1e-2, rtol=1e-2), (
        float(jnp.max(jnp.abs(out - ref))))

    print("KERNEL_OK")
</pallas_src>

<mosaic_0001>
module attributes {stable_mosaic.version = 11 : i64} {
  func.func @kernel(%arg0: i32, %arg1: memref<128x128xf32, #tpu.memory_space<vmem>>, %arg2: memref<128x64xbf16, #tpu.memory_space<vmem>>, %arg3: memref<1x64xf32, #tpu.memory_space<vmem>>, %arg4: memref<64x32xbf16, #tpu.memory_space<vmem>>, %arg5: memref<1x32xf32, #tpu.memory_space<vmem>>, %arg6: memref<32x16xbf16, #tpu.memory_space<vmem>>, %arg7: memref<1x16xf32, #tpu.memory_space<vmem>>, %arg8: memref<16x32xbf16, #tpu.memory_space<vmem>>, %arg9: memref<1x32xf32, #tpu.memory_space<vmem>>, %arg10: memref<32x64xbf16, #tpu.memory_space<vmem>>, %arg11: memref<1x64xf32, #tpu.memory_space<vmem>>, %arg12: memref<64x128xbf16, #tpu.memory_space<vmem>>, %arg13: memref<1x128xf32, #tpu.memory_space<vmem>>, %arg14: memref<128x128xf32, #tpu.memory_space<vmem>>) attributes {dimension_semantics = [#tpu.dimension_semantics<parallel>], iteration_bounds = array<i64: 2>, scalar_prefetch = 0 : i64, scratch_operands = 0 : i64, tpu.core_type = #tpu.core_type<tc>, window_params = [{transform_indices = @transform_0, window_bounds = array<i64: 128, 128>}, {pipeline_mode = #tpu.pipeline_mode<synchronous>, transform_indices = @transform_1, window_bounds = array<i64: 128, 64>}, {pipeline_mode = #tpu.pipeline_mode<synchronous>, transform_indices = @transform_2, window_bounds = array<i64: 1, 64>}, {pipeline_mode = #tpu.pipeline_mode<synchronous>, transform_indices = @transform_3, window_bounds = array<i64: 64, 32>}, {pipeline_mode = #tpu.pipeline_mode<synchronous>, transform_indices = @transform_4, window_bounds = array<i64: 1, 32>}, {pipeline_mode = #tpu.pipeline_mode<synchronous>, transform_indices = @transform_5, window_bounds = array<i64: 32, 16>}, {pipeline_mode = #tpu.pipeline_mode<synchronous>, transform_indices = @transform_6, window_bounds = array<i64: 1, 16>}, {pipeline_mode = #tpu.pipeline_mode<synchronous>, transform_indices = @transform_7, window_bounds = array<i64: 16, 32>}, {pipeline_mode = #tpu.pipeline_mode<synchronous>, transform_indices = @transform_8, window_bounds = array<i64: 1, 32>}, {pipeline_mode = #tpu.pipeline_mode<synchronous>, transform_indices = @transform_9, window_bounds = array<i64: 32, 64>}, {pipeline_mode = #tpu.pipeline_mode<synchronous>, transform_indices = @transform_10, window_bounds = array<i64: 1, 64>}, {pipeline_mode = #tpu.pipeline_mode<synchronous>, transform_indices = @transform_11, window_bounds = array<i64: 64, 128>}, {pipeline_mode = #tpu.pipeline_mode<synchronous>, transform_indices = @transform_12, window_bounds = array<i64: 1, 128>}, {transform_indices = @transform_13, window_bounds = array<i64: 128, 128>}]} {
    %c0 = arith.constant 0 : index
    %c0_0 = arith.constant 0 : index
    %0 = vector.load %arg1[%c0, %c0_0] : memref<128x128xf32, #tpu.memory_space<vmem>>, vector<128x128xf32>
    %c0_1 = arith.constant 0 : index
    %c0_2 = arith.constant 0 : index
    %1 = vector.load %arg2[%c0_1, %c0_2] : memref<128x64xbf16, #tpu.memory_space<vmem>>, vector<128x64xbf16>
    %c0_3 = arith.constant 0 : index
    %c0_4 = arith.constant 0 : index
    %2 = vector.load %arg3[%c0_3, %c0_4] : memref<1x64xf32, #tpu.memory_space<vmem>>, vector<1x64xf32>
    %3 = arith.truncf %0 : vector<128x128xf32> to vector<128x128xbf16>
    %cst = arith.constant dense<0.000000e+00> : vector<128x64xf32>
    %4 = tpu.matmul %3, %1, %cst {dimension_numbers = #tpu.dot_dimension_numbers<[1], [0], [0], [1], [0, 0, 1, 1], [], []>} : vector<128x128xbf16>, vector<128x64xbf16>, vector<128x64xf32> -> vector<128x64xf32>
    %5 = vector.broadcast %2 : vector<1x64xf32> to vector<128x64xf32>
    %6 = arith.addf %4, %5 : vector<128x64xf32>
    %cst_5 = arith.constant 0.000000e+00 : f32
    %7 = vector.broadcast %cst_5 : f32 to vector<128x64xf32>
    %8 = arith.maximumf %6, %7 : vector<128x64xf32>
    %c0_6 = arith.constant 0 : index
    %c0_7 = arith.constant 0 : index
    %9 = vector.load %arg4[%c0_6, %c0_7] : memref<64x32xbf16, #tpu.memory_space<vmem>>, vector<64x32xbf16>
    %c0_8 = arith.constant 0 : index
    %c0_9 = arith.constant 0 : index
    %10 = vector.load %arg5[%c0_8, %c0_9] : memref<1x32xf32, #tpu.memory_space<vmem>>, vector<1x32xf32>
    %11 = arith.truncf %8 : vector<128x64xf32> to vector<128x64xbf16>
    %cst_10 = arith.constant dense<0.000000e+00> : vector<128x32xf32>
    %12 = tpu.matmul %11, %9, %cst_10 {dimension_numbers = #tpu.dot_dimension_numbers<[1], [0], [0], [1], [0, 0, 1, 1], [], []>} : vector<128x64xbf16>, vector<64x32xbf16>, vector<128x32xf32> -> vector<128x32xf32>
    %13 = vector.broadcast %10 : vector<1x32xf32> to vector<128x32xf32>
    %14 = arith.addf %12, %13 : vector<128x32xf32>
    %cst_11 = arith.constant 0.000000e+00 : f32
    %15 = vector.broadcast %cst_11 : f32 to vector<128x32xf32>
    %16 = arith.maximumf %14, %15 : vector<128x32xf32>
    %c0_12 = arith.constant 0 : index
    %c0_13 = arith.constant 0 : index
    %17 = vector.load %arg6[%c0_12, %c0_13] : memref<32x16xbf16, #tpu.memory_space<vmem>>, vector<32x16xbf16>
    %c0_14 = arith.constant 0 : index
    %c0_15 = arith.constant 0 : index
    %18 = vector.load %arg7[%c0_14, %c0_15] : memref<1x16xf32, #tpu.memory_space<vmem>>, vector<1x16xf32>
    %19 = arith.truncf %16 : vector<128x32xf32> to vector<128x32xbf16>
    %cst_16 = arith.constant dense<0.000000e+00> : vector<128x16xf32>
    %20 = tpu.matmul %19, %17, %cst_16 {dimension_numbers = #tpu.dot_dimension_numbers<[1], [0], [0], [1], [0, 0, 1, 1], [], []>} : vector<128x32xbf16>, vector<32x16xbf16>, vector<128x16xf32> -> vector<128x16xf32>
    %21 = vector.broadcast %18 : vector<1x16xf32> to vector<128x16xf32>
    %22 = arith.addf %20, %21 : vector<128x16xf32>
    %c0_17 = arith.constant 0 : index
    %c0_18 = arith.constant 0 : index
    %23 = vector.load %arg8[%c0_17, %c0_18] : memref<16x32xbf16, #tpu.memory_space<vmem>>, vector<16x32xbf16>
    %c0_19 = arith.constant 0 : index
    %c0_20 = arith.constant 0 : index
    %24 = vector.load %arg9[%c0_19, %c0_20] : memref<1x32xf32, #tpu.memory_space<vmem>>, vector<1x32xf32>
    %25 = arith.truncf %22 : vector<128x16xf32> to vector<128x16xbf16>
    %cst_21 = arith.constant dense<0.000000e+00> : vector<128x32xf32>
    %26 = tpu.matmul %25, %23, %cst_21 {dimension_numbers = #tpu.dot_dimension_numbers<[1], [0], [0], [1], [0, 0, 1, 1], [], []>} : vector<128x16xbf16>, vector<16x32xbf16>, vector<128x32xf32> -> vector<128x32xf32>
    %27 = vector.broadcast %24 : vector<1x32xf32> to vector<128x32xf32>
    %28 = arith.addf %26, %27 : vector<128x32xf32>
    %cst_22 = arith.constant 0.000000e+00 : f32
    %29 = vector.broadcast %cst_22 : f32 to vector<128x32xf32>
    %30 = arith.maximumf %28, %29 : vector<128x32xf32>
    %c0_23 = arith.constant 0 : index
    %c0_24 = arith.constant 0 : index
    %31 = vector.load %arg10[%c0_23, %c0_24] : memref<32x64xbf16, #tpu.memory_space<vmem>>, vector<32x64xbf16>
    %c0_25 = arith.constant 0 : index
    %c0_26 = arith.constant 0 : index
    %32 = vector.load %arg11[%c0_25, %c0_26] : memref<1x64xf32, #tpu.memory_space<vmem>>, vector<1x64xf32>
    %33 = arith.truncf %30 : vector<128x32xf32> to vector<128x32xbf16>
    %cst_27 = arith.constant dense<0.000000e+00> : vector<128x64xf32>
    %34 = tpu.matmul %33, %31, %cst_27 {dimension_numbers = #tpu.dot_dimension_numbers<[1], [0], [0], [1], [0, 0, 1, 1], [], []>} : vector<128x32xbf16>, vector<32x64xbf16>, vector<128x64xf32> -> vector<128x64xf32>
    %35 = vector.broadcast %32 : vector<1x64xf32> to vector<128x64xf32>
    %36 = arith.addf %34, %35 : vector<128x64xf32>
    %cst_28 = arith.constant 0.000000e+00 : f32
    %37 = vector.broadcast %cst_28 : f32 to vector<128x64xf32>
    %38 = arith.maximumf %36, %37 : vector<128x64xf32>
    %c0_29 = arith.constant 0 : index
    %c0_30 = arith.constant 0 : index
    %39 = vector.load %arg12[%c0_29, %c0_30] : memref<64x128xbf16, #tpu.memory_space<vmem>>, vector<64x128xbf16>
    %c0_31 = arith.constant 0 : index
    %c0_32 = arith.constant 0 : index
    %40 = vector.load %arg13[%c0_31, %c0_32] : memref<1x128xf32, #tpu.memory_space<vmem>>, vector<1x128xf32>
    %41 = arith.truncf %38 : vector<128x64xf32> to vector<128x64xbf16>
    %cst_33 = arith.constant dense<0.000000e+00> : vector<128x128xf32>
    %42 = tpu.matmul %41, %39, %cst_33 {dimension_numbers = #tpu.dot_dimension_numbers<[1], [0], [0], [1], [0, 0, 1, 1], [], []>} : vector<128x64xbf16>, vector<64x128xbf16>, vector<128x128xf32> -> vector<128x128xf32>
    %43 = vector.broadcast %40 : vector<1x128xf32> to vector<128x128xf32>
    %44 = arith.addf %42, %43 : vector<128x128xf32>
    %cst_34 = arith.constant 0.000000e+00 : f32
    %45 = vector.broadcast %cst_34 : f32 to vector<128x128xf32>
    %46 = arith.subf %45, %44 : vector<128x128xf32>
    %47 = math.exp %46 : vector<128x128xf32>
    %cst_35 = arith.constant 1.000000e+00 : f32
    %48 = vector.broadcast %cst_35 : f32 to vector<128x128xf32>
    %49 = arith.addf %48, %47 : vector<128x128xf32>
    %50 = tpu.reciprocal %49 {approx = true} : vector<128x128xf32> -> vector<128x128xf32>
    %c0_36 = arith.constant 0 : index
    %c0_37 = arith.constant 0 : index
    %51 = vector.load %arg14[%c0_36, %c0_37] : memref<128x128xf32, #tpu.memory_space<vmem>>, vector<128x128xf32>
    tpu.vector_store %arg14[%c0_36, %c0_37], %50 {strides = array<i32>} : memref<128x128xf32, #tpu.memory_space<vmem>>, vector<128x128xf32>,
    return
  }
  func.func @transform_0(%arg0: i32) -> (i32, i32) {
    %c0_i32 = arith.constant 0 : i32
    %c0_i32_0 = arith.constant 0 : i32
    return %arg0, %c0_i32 : i32, i32
  }
  func.func @transform_1(%arg0: i32) -> (i32, i32) {
    %c0_i32 = arith.constant 0 : i32
    %c0_i32_0 = arith.constant 0 : i32
    %c0_i32_1 = arith.constant 0 : i32
    return %c0_i32, %c0_i32_0 : i32, i32
  }
  func.func @transform_2(%arg0: i32) -> (i32, i32) {
    %c0_i32 = arith.constant 0 : i32
    %c0_i32_0 = arith.constant 0 : i32
    %c0_i32_1 = arith.constant 0 : i32
    return %c0_i32, %c0_i32_0 : i32, i32
  }
  func.func @transform_3(%arg0: i32) -> (i32, i32) {
    %c0_i32 = arith.constant 0 : i32
    %c0_i32_0 = arith.constant 0 : i32
    %c0_i32_1 = arith.constant 0 : i32
    return %c0_i32, %c0_i32_0 : i32, i32
  }
  func.func @transform_4(%arg0: i32) -> (i32, i32) {
    %c0_i32 = arith.constant 0 : i32
    %c0_i32_0 = arith.constant 0 : i32
    %c0_i32_1 = arith.constant 0 : i32
    return %c0_i32, %c0_i32_0 : i32, i32
  }
  func.func @transform_5(%arg0: i32) -> (i32, i32) {
    %c0_i32 = arith.constant 0 : i32
    %c0_i32_0 = arith.constant 0 : i32
    %c0_i32_1 = arith.constant 0 : i32
    return %c0_i32, %c0_i32_0 : i32, i32
  }
  func.func @transform_6(%arg0: i32) -> (i32, i32) {
    %c0_i32 = arith.constant 0 : i32
    %c0_i32_0 = arith.constant 0 : i32
    %c0_i32_1 = arith.constant 0 : i32
    return %c0_i32, %c0_i32_0 : i32, i32
  }
  func.func @transform_7(%arg0: i32) -> (i32, i32) {
    %c0_i32 = arith.constant 0 : i32
    %c0_i32_0 = arith.constant 0 : i32
    %c0_i32_1 = arith.constant 0 : i32
    return %c0_i32, %c0_i32_0 : i32, i32
  }
  func.func @transform_8(%arg0: i32) -> (i32, i32) {
    %c0_i32 = arith.constant 0 : i32
    %c0_i32_0 = arith.constant 0 : i32
    %c0_i32_1 = arith.constant 0 : i32
    return %c0_i32, %c0_i32_0 : i32, i32
  }
  func.func @transform_9(%arg0: i32) -> (i32, i32) {
    %c0_i32 = arith.constant 0 : i32
    %c0_i32_0 = arith.constant 0 : i32
    %c0_i32_1 = arith.constant 0 : i32
    return %c0_i32, %c0_i32_0 : i32, i32
  }
  func.func @transform_10(%arg0: i32) -> (i32, i32) {
    %c0_i32 = arith.constant 0 : i32
    %c0_i32_0 = arith.constant 0 : i32
    %c0_i32_1 = arith.constant 0 : i32
    return %c0_i32, %c0_i32_0 : i32, i32
  }
  func.func @transform_11(%arg0: i32) -> (i32, i32) {
    %c0_i32 = arith.constant 0 : i32
    %c0_i32_0 = arith.constant 0 : i32
    %c0_i32_1 = arith.constant 0 : i32
    return %c0_i32, %c0_i32_0 : i32, i32
  }
  func.func @transform_12(%arg0: i32) -> (i32, i32) {
    %c0_i32 = arith.constant 0 : i32
    %c0_i32_0 = arith.constant 0 : i32
    %c0_i32_1 = arith.constant 0 : i32
    return %c0_i32, %c0_i32_0 : i32, i32
  }
  func.func @transform_13(%arg0: i32) -> (i32, i32) {
    %c0_i32 = arith.constant 0 : i32
    %c0_i32_0 = arith.constant 0 : i32
    return %arg0, %c0_i32 : i32, i32
  }
}

</mosaic_0001>

<llo_original>
// kernel: autoencoder_forward.1
$region0: #{autoencoder_forward.1}
  #allocation0 [shape = 'u32[]', space=smem, size = 0x4, offset = 0x4, fixed_abs, tag = 'smem constant byte address 0x4 - core index']
  #allocation1 [shape = 'u32[72,128]{1,0:T(1,128)}', space=vmem, size = 0x9000, scoped, tag = 'internal scratch']
  %s0 = inlined_call_operand.hbm [shape: f32[256,128], index: 0, kind: input, shape index: {}]
  %s1 = inlined_call_operand.vmem [shape: bf16[128,64], index: 1, kind: input, shape index: {}]
  %s2 = inlined_call_operand.vmem [shape: f32[1,64], index: 2, kind: input, shape index: {}]
  %s3 = inlined_call_operand.vmem [shape: bf16[64,32], index: 3, kind: input, shape index: {}]
  %s4 = inlined_call_operand.vmem [shape: f32[1,32], index: 4, kind: input, shape index: {}]
  %s5 = inlined_call_operand.vmem [shape: bf16[32,16], index: 5, kind: input, shape index: {}]
  %s6 = inlined_call_operand.vmem [shape: f32[1,16], index: 6, kind: input, shape index: {}]
  %s7 = inlined_call_operand.vmem [shape: bf16[16,32], index: 7, kind: input, shape index: {}]
  %s8 = inlined_call_operand.vmem [shape: f32[1,32], index: 8, kind: input, shape index: {}]
  %s9 = inlined_call_operand.vmem [shape: bf16[32,64], index: 9, kind: input, shape index: {}]
  %s10 = inlined_call_operand.vmem [shape: f32[1,64], index: 10, kind: input, shape index: {}]
  %s11 = inlined_call_operand.vmem [shape: bf16[64,128], index: 11, kind: input, shape index: {}]
  %s12 = inlined_call_operand.vmem [shape: f32[1,128], index: 12, kind: input, shape index: {}]
  %s13 = inlined_call_operand.hbm [shape: f32[256,128], index: 13, kind: output, shape index: {}]
  %s14 = sld [smem:[#allocation0]]
  $region89: #{autoencoder_forward.1} parent=0
    _
  %s16 = ssub.s32 1, %s14
  %s17 = scalar_select 0, %s16, %s14
  $region1: #{autoencoder_forward.1} parent=0
    #allocation2 [shape = 'u8[131072]{0}', space=vmem, size = 0x20000, scoped, tag = 'input window, operand 0']
    #allocation3 [shape = 's32[2]{0}', space=sflag, size = 0x8, scoped, tag = 'scoped memory for autoencoder_forward.1']
    #allocation4 [shape = 's32[2]{0}', space=sflag, size = 0x8, scoped, tag = 'scoped memory for autoencoder_forward.1']
    #allocation5 [shape = 'u8[131072]{0}', space=vmem, size = 0x20000, scoped, tag = 'output window, operand 0']
    %18 = vsyncpa [#allocation3], 0
    %s19 = scalar_lea.sflag [#allocation3], 1
    %20 = vsyncpa %s19, 0
    %21 = vsyncpa [#allocation4], 0
    %s22 = scalar_lea.sflag [#allocation4], 1
    %23 = vsyncpa %s22, 0
    loop: start=0, step=1, limit=4
    $region2: #{autoencoder_forward.1} parent=1 // loop_pre_header
      _
    $region3: #{autoencoder_forward.1} parent=1 // loop_header
      %s25 = sphi 0, %s29
      %p26 = scmp.ge.s32.totalorder %s25, 4
      %s35 = sphi 0, %s37
      %s38 = sphi 0, %s35
      %s39 = sphi 0, %s38
      %s55 = sphi 0, %s39
      %s59 = sphi 0, %s59
      %s61 = sphi 0, %s59
      %s62 = sphi 0, %s61
      %s76 = sphi 0, %s62
      %s80 = sphi 0, %s80
      %s82 = sphi 0, %s80
      %s83 = sphi 0, %s82
      %s97 = sphi 0, %s83
      %s101 = sphi 0, %s101
      %s103 = sphi 0, %s101
      %s104 = sphi 0, %s103
      %s118 = sphi 0, %s104
      %s122 = sphi 0, %s122
      %s124 = sphi 0, %s122
      %s125 = sphi 0, %s124
      %s139 = sphi 0, %s125
      %s143 = sphi 0, %s143
      %s145 = sphi 0, %s143
      %s146 = sphi 0, %s145
      %s160 = sphi 0, %s146
      %s164 = sphi 0, %s164
      %s166 = sphi 0, %s164
      %s167 = sphi 0, %s166
      %s181 = sphi 0, %s167
      %s185 = sphi 0, %s185
      %s187 = sphi 0, %s185
      %s188 = sphi 0, %s187
      %s202 = sphi 0, %s188
      %s206 = sphi 0, %s206
      %s208 = sphi 0, %s206
      %s209 = sphi 0, %s208
      %s223 = sphi 0, %s209
      %s227 = sphi 0, %s227
      %s229 = sphi 0, %s227
      %s230 = sphi 0, %s229
      %s244 = sphi 0, %s230
      %s248 = sphi 0, %s248
      %s250 = sphi 0, %s248
      %s251 = sphi 0, %s250
      %s265 = sphi 0, %s251
      %s269 = sphi 0, %s269
      %s271 = sphi 0, %s269
      %s272 = sphi 0, %s271
      %s286 = sphi 0, %s272
      %s290 = sphi 0, %s290
      %s292 = sphi 0, %s290
      %s293 = sphi 0, %s292
      %s307 = sphi 0, %s293
      %s313 = sphi 0, %s315
      %s316 = sphi 0, %s313
      %s317 = sphi 0, %s316
      %s333 = sphi 0, %s317
    $region4: #{autoencoder_forward.1} parent=1 // loop_header_branch
      %28 = sbr.rel (%p26) target = $region8
    $region5: #{autoencoder_forward.1} parent=1 // loop_body
      %s30 = ssub.s32 %s25, 1
      %s31 = ssub.s32 %s25, 2
      %s32 = sadd.s32 %s25, 1
      %s33 = ssub.s32 %s25, %s32
      %p34 = scmp.eq.s32.totalorder %s33, 0
      %s36 = sadd.s32 %s35, 1
      %s37 = scalar_select %p34, %s35, %s36
      %p40 = pneg %p34
      %p41 = scmp.eq.s32.totalorder %s25, 1
      %p42 = por %p40, %p41
      %p43 = scmp.ne.s32.totalorder %s35, %s38
      %p44 = scmp.eq.s32.totalorder %s25, 0
      %p45 = por %p43, %p44
      %p46 = scmp.ne.s32.totalorder %s35, %s38
      %p47 = scmp.eq.s32.totalorder %s30, 1
      %p48 = por %p46, %p47
      %p49 = scmp.ne.s32.totalorder %s38, %s39
      %p50 = scmp.eq.s32.totalorder %s30, 0
      %p51 = por %p49, %p50
      %p52 = scmp.ne.s32.totalorder %s38, %s39
      %p53 = scmp.eq.s32.totalorder %s31, 1
      %p54 = por %p52, %p53
      %p56 = scmp.ne.s32.totalorder %s39, %s55
      %p57 = scmp.eq.s32.totalorder %s31, 0
      %p58 = por %p56, %p57
      %s60 = sadd.s32 %s59, 1
      %p63 = scmp.eq.s32.totalorder %s25, 1
      %p64 = scmp.ne.s32.totalorder %s59, %s61
      %p65 = scmp.eq.s32.totalorder %s25, 0
      %p66 = por %p64, %p65
      %p67 = scmp.ne.s32.totalorder %s59, %s61
      %p68 = scmp.eq.s32.totalorder %s30, 1
      %p69 = por %p67, %p68
      %p70 = scmp.ne.s32.totalorder %s61, %s62
      %p71 = scmp.eq.s32.totalorder %s30, 0
      %p72 = por %p70, %p71
      %p73 = scmp.ne.s32.totalorder %s61, %s62
      %p74 = scmp.eq.s32.totalorder %s31, 1
      %p75 = por %p73, %p74
      %p77 = scmp.ne.s32.totalorder %s62, %s76
      %p78 = scmp.eq.s32.totalorder %s31, 0
      %p79 = por %p77, %p78
      %s81 = sadd.s32 %s80, 1
      %p84 = scmp.eq.s32.totalorder %s25, 1
      %p85 = scmp.ne.s32.totalorder %s80, %s82
      %p86 = scmp.eq.s32.totalorder %s25, 0
      %p87 = por %p85, %p86
      %p88 = scmp.ne.s32.totalorder %s80, %s82
      %p89 = scmp.eq.s32.totalorder %s30, 1
      %p90 = por %p88, %p89
      %p91 = scmp.ne.s32.totalorder %s82, %s83
      %p92 = scmp.eq.s32.totalorder %s30, 0
      %p93 = por %p91, %p92
      %p94 = scmp.ne.s32.totalorder %s82, %s83
      %p95 = scmp.eq.s32.totalorder %s31, 1
      %p96 = por %p94, %p95
      %p98 = scmp.ne.s32.totalorder %s83, %s97
      %p99 = scmp.eq.s32.totalorder %s31, 0
      %p100 = por %p98, %p99
      %s102 = sadd.s32 %s101, 1
      %p105 = scmp.eq.s32.totalorder %s25, 1
      %p106 = scmp.ne.s32.totalorder %s101, %s103
      %p107 = scmp.eq.s32.totalorder %s25, 0
      %p108 = por %p106, %p107
      %p109 = scmp.ne.s32.totalorder %s101, %s103
      %p110 = scmp.eq.s32.totalorder %s30, 1
      %p111 = por %p109, %p110
      %p112 = scmp.ne.s32.totalorder %s103, %s104
      %p113 = scmp.eq.s32.totalorder %s30, 0
      %p114 = por %p112, %p113
      %p115 = scmp.ne.s32.totalorder %s103, %s104
      %p116 = scmp.eq.s32.totalorder %s31, 1
      %p117 = por %p115, %p116
      %p119 = scmp.ne.s32.totalorder %s104, %s118
      %p120 = scmp.eq.s32.totalorder %s31, 0
      %p121 = por %p119, %p120
      %s123 = sadd.s32 %s122, 1
      %p126 = scmp.eq.s32.totalorder %s25, 1
      %p127 = scmp.ne.s32.totalorder %s122, %s124
      %p128 = scmp.eq.s32.totalorder %s25, 0
      %p129 = por %p127, %p128
      %p130 = scmp.ne.s32.totalorder %s122, %s124
      %p131 = scmp.eq.s32.totalorder %s30, 1
      %p132 = por %p130, %p131
      %p133 = scmp.ne.s32.totalorder %s124, %s125
      %p134 = scmp.eq.s32.totalorder %s30, 0
      %p135 = por %p133, %p134
      %p136 = scmp.ne.s32.totalorder %s124, %s125
      %p137 = scmp.eq.s32.totalorder %s31, 1
      %p138 = por %p136, %p137
      %p140 = scmp.ne.s32.totalorder %s125, %s139
      %p141 = scmp.eq.s32.totalorder %s31, 0
      %p142 = por %p140, %p141
      %s144 = sadd.s32 %s143, 1
      %p147 = scmp.eq.s32.totalorder %s25, 1
      %p148 = scmp.ne.s32.totalorder %s143, %s145
      %p149 = scmp.eq.s32.totalorder %s25, 0
      %p150 = por %p148, %p149
      %p151 = scmp.ne.s32.totalorder %s143, %s145
      %p152 = scmp.eq.s32.totalorder %s30, 1
      %p153 = por %p151, %p152
      %p154 = scmp.ne.s32.totalorder %s145, %s146
      %p155 = scmp.eq.s32.totalorder %s30, 0
      %p156 = por %p154, %p155
      %p157 = scmp.ne.s32.totalorder %s145, %s146
      %p158 = scmp.eq.s32.totalorder %s31, 1
      %p159 = por %p157, %p158
      %p161 = scmp.ne.s32.totalorder %s146, %s160
      %p162 = scmp.eq.s32.totalorder %s31, 0
      %p163 = por %p161, %p162
      %s165 = sadd.s32 %s164, 1
      %p168 = scmp.eq.s32.totalorder %s25, 1
      %p169 = scmp.ne.s32.totalorder %s164, %s166
      %p170 = scmp.eq.s32.totalorder %s25, 0
      %p171 = por %p169, %p170
      %p172 = scmp.ne.s32.totalorder %s164, %s166
      %p173 = scmp.eq.s32.totalorder %s30, 1
      %p174 = por %p172, %p173
      %p175 = scmp.ne.s32.totalorder %s166, %s167
      %p176 = scmp.eq.s32.totalorder %s30, 0
      %p177 = por %p175, %p176
      %p178 = scmp.ne.s32.totalorder %s166, %s167
      %p179 = scmp.eq.s32.totalorder %s31, 1
      %p180 = por %p178, %p179
      %p182 = scmp.ne.s32.totalorder %s167, %s181
      %p183 = scmp.eq.s32.totalorder %s31, 0
      %p184 = por %p182, %p183
      %s186 = sadd.s32 %s185, 1
      %p189 = scmp.eq.s32.totalorder %s25, 1
      %p190 = scmp.ne.s32.totalorder %s185, %s187
      %p191 = scmp.eq.s32.totalorder %s25, 0
      %p192 = por %p190, %p191
      %p193 = scmp.ne.s32.totalorder %s185, %s187
      %p194 = scmp.eq.s32.totalorder %s30, 1
      %p195 = por %p193, %p194
      %p196 = scmp.ne.s32.totalorder %s187, %s188
      %p197 = scmp.eq.s32.totalorder %s30, 0
      %p198 = por %p196, %p197
      %p199 = scmp.ne.s32.totalorder %s187, %s188
      %p200 = scmp.eq.s32.totalorder %s31, 1
      %p201 = por %p199, %p200
      %p203 = scmp.ne.s32.totalorder %s188, %s202
      %p204 = scmp.eq.s32.totalorder %s31, 0
      %p205 = por %p203, %p204
      %s207 = sadd.s32 %s206, 1
      %p210 = scmp.eq.s32.totalorder %s25, 1
      %p211 = scmp.ne.s32.totalorder %s206, %s208
      %p212 = scmp.eq.s32.totalorder %s25, 0
      %p213 = por %p211, %p212
      %p214 = scmp.ne.s32.totalorder %s206, %s208
      %p215 = scmp.eq.s32.totalorder %s30, 1
      %p216 = por %p214, %p215
      %p217 = scmp.ne.s32.totalorder %s208, %s209
      %p218 = scmp.eq.s32.totalorder %s30, 0
      %p219 = por %p217, %p218
      %p220 = scmp.ne.s32.totalorder %s208, %s209
      %p221 = scmp.eq.s32.totalorder %s31, 1
      %p222 = por %p220, %p221
      %p224 = scmp.ne.s32.totalorder %s209, %s223
      %p225 = scmp.eq.s32.totalorder %s31, 0
      %p226 = por %p224, %p225
      %s228 = sadd.s32 %s227, 1
      %p231 = scmp.eq.s32.totalorder %s25, 1
      %p232 = scmp.ne.s32.totalorder %s227, %s229
      %p233 = scmp.eq.s32.totalorder %s25, 0
      %p234 = por %p232, %p233
      %p235 = scmp.ne.s32.totalorder %s227, %s229
      %p236 = scmp.eq.s32.totalorder %s30, 1
      %p237 = por %p235, %p236
      %p238 = scmp.ne.s32.totalorder %s229, %s230
      %p239 = scmp.eq.s32.totalorder %s30, 0
      %p240 = por %p238, %p239
      %p241 = scmp.ne.s32.totalorder %s229, %s230
      %p242 = scmp.eq.s32.totalorder %s31, 1
      %p243 = por %p241, %p242
      %p245 = scmp.ne.s32.totalorder %s230, %s244
      %p246 = scmp.eq.s32.totalorder %s31, 0
      %p247 = por %p245, %p246
      %s249 = sadd.s32 %s248, 1
      %p252 = scmp.eq.s32.totalorder %s25, 1
      %p253 = scmp.ne.s32.totalorder %s248, %s250
      %p254 = scmp.eq.s32.totalorder %s25, 0
      %p255 = por %p253, %p254
      %p256 = scmp.ne.s32.totalorder %s248, %s250
      %p257 = scmp.eq.s32.totalorder %s30, 1
      %p258 = por %p256, %p257
      %p259 = scmp.ne.s32.totalorder %s250, %s251
      %p260 = scmp.eq.s32.totalorder %s30, 0
      %p261 = por %p259, %p260
      %p262 = scmp.ne.s32.totalorder %s250, %s251
      %p263 = scmp.eq.s32.totalorder %s31, 1
      %p264 = por %p262, %p263
      %p266 = scmp.ne.s32.totalorder %s251, %s265
      %p267 = scmp.eq.s32.totalorder %s31, 0
      %p268 = por %p266, %p267
      %s270 = sadd.s32 %s269, 1
      %p273 = scmp.eq.s32.totalorder %s25, 1
      %p274 = scmp.ne.s32.totalorder %s269, %s271
      %p275 = scmp.eq.s32.totalorder %s25, 0
      %p276 = por %p274, %p275
      %p277 = scmp.ne.s32.totalorder %s269, %s271
      %p278 = scmp.eq.s32.totalorder %s30, 1
      %p279 = por %p277, %p278
      %p280 = scmp.ne.s32.totalorder %s271, %s272
      %p281 = scmp.eq.s32.totalorder %s30, 0
      %p282 = por %p280, %p281
      %p283 = scmp.ne.s32.totalorder %s271, %s272
      %p284 = scmp.eq.s32.totalorder %s31, 1
      %p285 = por %p283, %p284
      %p287 = scmp.ne.s32.totalorder %s272, %s286
      %p288 = scmp.eq.s32.totalorder %s31, 0
      %p289 = por %p287, %p288
      %s291 = sadd.s32 %s290, 1
      %p294 = scmp.eq.s32.totalorder %s25, 1
      %p295 = scmp.ne.s32.totalorder %s290, %s292
      %p296 = scmp.eq.s32.totalorder %s25, 0
      %p297 = por %p295, %p296
      %p298 = scmp.ne.s32.totalorder %s290, %s292
      %p299 = scmp.eq.s32.totalorder %s30, 1
      %p300 = por %p298, %p299
      %p301 = scmp.ne.s32.totalorder %s292, %s293
      %p302 = scmp.eq.s32.totalorder %s30, 0
      %p303 = por %p301, %p302
      %p304 = scmp.ne.s32.totalorder %s292, %s293
      %p305 = scmp.eq.s32.totalorder %s31, 1
      %p306 = por %p304, %p305
      %p308 = scmp.ne.s32.totalorder %s293, %s307
      %p309 = scmp.eq.s32.totalorder %s31, 0
      %p310 = por %p308, %p309
      %s311 = ssub.s32 %s25, %s32
      %p312 = scmp.eq.s32.totalorder %s311, 0
      %s314 = sadd.s32 %s313, 1
      %s315 = scalar_select %p312, %s313, %s314
      %p318 = pneg %p312
      %p319 = scmp.eq.s32.totalorder %s25, 1
      %p320 = por %p318, %p319
      %p321 = scmp.ne.s32.totalorder %s313, %s316
      %p322 = scmp.eq.s32.totalorder %s25, 0
      %p323 = por %p321, %p322
      %p324 = scmp.ne.s32.totalorder %s313, %s316
      %p325 = scmp.eq.s32.totalorder %s30, 1
      %p326 = por %p324, %p325
      %p327 = scmp.ne.s32.totalorder %s316, %s317
      %p328 = scmp.eq.s32.totalorder %s30, 0
      %p329 = por %p327, %p328
      %p330 = scmp.ne.s32.totalorder %s316, %s317
      %p331 = scmp.eq.s32.totalorder %s31, 1
      %p332 = por %p330, %p331
      %p334 = scmp.ne.s32.totalorder %s317, %s333
      %p335 = scmp.eq.s32.totalorder %s31, 0
      %p336 = por %p334, %p335
      %p337 = scmp.le.s32.totalorder 1, %s25
      %p338 = scmp.lt.s32.totalorder %s25, 3
      %p339 = pnand %p337, %p338
      %p340 = pneg %p339
      // Predicated region
      $region9: #{autoencoder_forward.1} parent=5 // pred_check
        _
      $region10: #{autoencoder_forward.1} parent=5 // pred_check_branch
        %342 = sbr.rel (%p339) target = $region12
      $region11: #{autoencoder_forward.1} parent=5 // pred_region
        %s343 = ssub.s32 %s25, 1
        // Predicated region
        $region13: #{autoencoder_forward.1} parent=11 // pred_check
          %p344 = pneg %p72
        $region14: #{autoencoder_forward.1} parent=11 // pred_check_branch
          %346 = sbr.rel (%p344) target = $region16
        $region15: #{autoencoder_forward.1} parent=11 // pred_region
          _
        $region16: #{autoencoder_forward.1} parent=11 // pred_fallthru
          _
        // Predicated region
        $region17: #{autoencoder_forward.1} parent=11 // pred_check
          %p347 = pneg %p93
        $region18: #{autoencoder_forward.1} parent=11 // pred_check_branch
          %349 = sbr.rel (%p347) target = $region20
        $region19: #{autoencoder_forward.1} parent=11 // pred_region
          _
        $region20: #{autoencoder_forward.1} parent=11 // pred_fallthru
          _
        // Predicated region
        $region21: #{autoencoder_forward.1} parent=11 // pred_check
          %p350 = pneg %p114
        $region22: #{autoencoder_forward.1} parent=11 // pred_check_branch
          %352 = sbr.rel (%p350) target = $region24
        $region23: #{autoencoder_forward.1} parent=11 // pred_region
          _
        $region24: #{autoencoder_forward.1} parent=11 // pred_fallthru
          _
        // Predicated region
        $region25: #{autoencoder_forward.1} parent=11 // pred_check
          %p353 = pneg %p135
        $region26: #{autoencoder_forward.1} parent=11 // pred_check_branch
          %355 = sbr.rel (%p353) target = $region28
        $region27: #{autoencoder_forward.1} parent=11 // pred_region
          _
        $region28: #{autoencoder_forward.1} parent=11 // pred_fallthru
          _
        // Predicated region
        $region29: #{autoencoder_forward.1} parent=11 // pred_check
          %p356 = pneg %p156
        $region30: #{autoencoder_forward.1} parent=11 // pred_check_branch
          %358 = sbr.rel (%p356) target = $region32
        $region31: #{autoencoder_forward.1} parent=11 // pred_region
          _
        $region32: #{autoencoder_forward.1} parent=11 // pred_fallthru
          _
        // Predicated region
        $region33: #{autoencoder_forward.1} parent=11 // pred_check
          %p359 = pneg %p177
        $region34: #{autoencoder_forward.1} parent=11 // pred_check_branch
          %361 = sbr.rel (%p359) target = $region36
        $region35: #{autoencoder_forward.1} parent=11 // pred_region
          _
        $region36: #{autoencoder_forward.1} parent=11 // pred_fallthru
          _
        // Predicated region
        $region37: #{autoencoder_forward.1} parent=11 // pred_check
          %p362 = pneg %p198
        $region38: #{autoencoder_forward.1} parent=11 // pred_check_branch
          %364 = sbr.rel (%p362) target = $region40
        $region39: #{autoencoder_forward.1} parent=11 // pred_region
          _
        $region40: #{autoencoder_forward.1} parent=11 // pred_fallthru
          _
        // Predicated region
        $region41: #{autoencoder_forward.1} parent=11 // pred_check
          %p365 = pneg %p219
        $region42: #{autoencoder_forward.1} parent=11 // pred_check_branch
          %367 = sbr.rel (%p365) target = $region44
        $region43: #{autoencoder_forward.1} parent=11 // pred_region
          _
        $region44: #{autoencoder_forward.1} parent=11 // pred_fallthru
          _
        // Predicated region
        $region45: #{autoencoder_forward.1} parent=11 // pred_check
          %p368 = pneg %p240
        $region46: #{autoencoder_forward.1} parent=11 // pred_check_branch
          %370 = sbr.rel (%p368) target = $region48
        $region47: #{autoencoder_forward.1} parent=11 // pred_region
          _
        $region48: #{autoencoder_forward.1} parent=11 // pred_fallthru
          _
        // Predicated region
        $region49: #{autoencoder_forward.1} parent=11 // pred_check
          %p371 = pneg %p261
        $region50: #{autoencoder_forward.1} parent=11 // pred_check_branch
          %373 = sbr.rel (%p371) target = $region52
        $region51: #{autoencoder_forward.1} parent=11 // pred_region
          _
        $region52: #{autoencoder_forward.1} parent=11 // pred_fallthru
          _
        // Predicated region
        $region53: #{autoencoder_forward.1} parent=11 // pred_check
          %p374 = pneg %p282
        $region54: #{autoencoder_forward.1} parent=11 // pred_check_branch
          %376 = sbr.rel (%p374) target = $region56
        $region55: #{autoencoder_forward.1} parent=11 // pred_region
          _
        $region56: #{autoencoder_forward.1} parent=11 // pred_fallthru
          _
        // Predicated region
        $region57: #{autoencoder_forward.1} parent=11 // pred_check
          %p377 = pneg %p303
        $region58: #{autoencoder_forward.1} parent=11 // pred_check_branch
          %379 = sbr.rel (%p377) target = $region60
        $region59: #{autoencoder_forward.1} parent=11 // pred_region
          _
        $region60: #{autoencoder_forward.1} parent=11 // pred_fallthru
          _
      $region12: #{autoencoder_forward.1} parent=5 // pred_fallthru
        _
      %p380 = scmp.lt.s32.totalorder %s25, 2
      // Predicated region
      $region61: #{autoencoder_forward.1} parent=5 // pred_check
        %p381 = pneg %p380
      $region62: #{autoencoder_forward.1} parent=5 // pred_check_branch
        %383 = sbr.rel (%p381) target = $region64
      $region63: #{autoencoder_forward.1} parent=5 // pred_region
        // Predicated region
        $region65: #{autoencoder_forward.1} parent=63 // pred_check
          %p384 = pneg %p45
        $region66: #{autoencoder_forward.1} parent=63 // pred_check_branch
          %386 = sbr.rel (%p384) target = $region68
        $region67: #{autoencoder_forward.1} parent=63 // pred_region
          %s387 = sand.u32 %s35, 1
          %s388 = scalar_lea.sflag [#allocation3], %s387
          %s389 = sand.u32 %s35, 1
          %s390 = smul.addr %s389, 128
          %s391 = scalar_lea.vmem [#allocation2], %s390
          %s392 = smul.u32 16, %s25
          %394 = vsyncadd %s388, 0
          %s395 = smul.addr %s392, 8
          %s396 = scalar_lea.hbm %s0, %s395
          %s397 = sshll.u32 %s396, 4
          %s398 = int_to_ptr.hbm [resolvable:$true] %s397
          %s399 = sshll.u32 %s391, 4
          %s400 = int_to_ptr.vmem [resolvable:$true] %s399
          %405 = dma.hbm_to_vmem [thread:$0]  %s398, 2048, %s400, %s388, 128, 128, 8
        $region68: #{autoencoder_forward.1} parent=63 // pred_fallthru
          _
      $region64: #{autoencoder_forward.1} parent=5 // pred_fallthru
        _
      %p406 = scmp.le.s32.totalorder 1, %s25
      %p407 = scmp.lt.s32.totalorder %s25, 3
      %p408 = pnand %p406, %p407
      %p409 = pneg %p408
      // Predicated region
      $region69: #{autoencoder_forward.1} parent=5 // pred_check
        _
      $region70: #{autoencoder_forward.1} parent=5 // pred_check_branch
        %411 = sbr.rel (%p408) target = $region72
      $region71: #{autoencoder_forward.1} parent=5 // pred_region
        %s412 = ssub.s32 %s25, 1
        %s413 = sand.u32 %s38, 1
        %s414 = scalar_lea.sflag [#allocation3], %s413
        %s415 = sand.u32 %s38, 1
        %s416 = smul.addr %s415, 128
        %s417 = scalar_lea.vmem [#allocation2], %s416
        // Predicated region
        $region73: #{autoencoder_forward.1} parent=71 // pred_check
          %p418 = pneg %p51
        $region74: #{autoencoder_forward.1} parent=71 // pred_check_branch
          %420 = sbr.rel (%p418) target = $region76
        $region75: #{autoencoder_forward.1} parent=71 // pred_region
          %422 = dma.done %s414, 2048
        $region76: #{autoencoder_forward.1} parent=71 // pred_fallthru
          _
        %s423 = sand.u32 %s38, 1
        %s424 = scalar_lea.sflag [#allocation3], %s423
        %s425 = sand.u32 %s38, 1
        %s426 = smul.addr %s425, 128
        %s427 = scalar_lea.vmem [#allocation2], %s426
        %p428 = pneg %p51
        %p429 = pneg %p48
        %p430 = pneg %p72
        %p431 = pneg %p69
        %p432 = pneg %p93
        %p433 = pneg %p90
        %p434 = pneg %p114
        %p435 = pneg %p111
        %p436 = pneg %p135
        %p437 = pneg %p132
        %p438 = pneg %p156
        %p439 = pneg %p153
        %p440 = pneg %p177
        %p441 = pneg %p174
        %p442 = pneg %p198
        %p443 = pneg %p195
        %p444 = pneg %p219
        %p445 = pneg %p216
        %p446 = pneg %p240
        %p447 = pneg %p237
        %p448 = pneg %p261
        %p449 = pneg %p258
        %p450 = pneg %p282
        %p451 = pneg %p279
        %p452 = pneg %p303
        %p453 = pneg %p300
        %p454 = pneg %p329
        %p455 = pneg %p326
        %s456 = sand.u32 %s316, 1
        %s457 = scalar_lea.sflag [#allocation4], %s456
        %s458 = sand.u32 %s316, 1
        %s459 = smul.addr %s458, 128
        %s460 = scalar_lea.vmem [#allocation5], %s459
        %s461 = smul.u32 16, %s30
        %s462 = smul.u32 16, %s30
        %v464 = vld [vmem:[%s417] sm:$0xff]
        %v465 = vld [vmem:[%s417 + $0x8] sm:$0xff]
        %v466 = vld [vmem:[%s417 + $0x10] sm:$0xff]
        %v467 = vld [vmem:[%s417 + $0x18] sm:$0xff]
        %v468 = vld [vmem:[%s417 + $0x20] sm:$0xff]
        %v469 = vld [vmem:[%s417 + $0x28] sm:$0xff]
        %v470 = vld [vmem:[%s417 + $0x30] sm:$0xff]
        %v471 = vld [vmem:[%s417 + $0x38] sm:$0xff]
        %v472 = vld [vmem:[%s417 + $0x40] sm:$0xff]
        %v473 = vld [vmem:[%s417 + $0x48] sm:$0xff]
        %v474 = vld [vmem:[%s417 + $0x50] sm:$0xff]
        %v475 = vld [vmem:[%s417 + $0x58] sm:$0xff]
        %v476 = vld [vmem:[%s417 + $0x60] sm:$0xff]
        %v477 = vld [vmem:[%s417 + $0x68] sm:$0xff]
        %v478 = vld [vmem:[%s417 + $0x70] sm:$0xff]
        %v479 = vld [vmem:[%s417 + $0x78] sm:$0xff]
        %v480 = vld [vmem:[%s1] sm:$0xf]
        %v481 = vld [vmem:[%s1 + $0x4] sm:$0xf]
        %v482 = vld [vmem:[%s1 + $0x8] sm:$0xf]
        %v483 = vld [vmem:[%s1 + $0xc] sm:$0xf]
        %v484 = vld [vmem:[%s1 + $0x10] sm:$0xf]
        %v485 = vld [vmem:[%s1 + $0x14] sm:$0xf]
        %v486 = vld [vmem:[%s1 + $0x18] sm:$0xf]
        %v487 = vld [vmem:[%s1 + $0x1c] sm:$0xf]
        %v488 = vld [vmem:[%s1 + $0x20] sm:$0xf]
        %v489 = vld [vmem:[%s1 + $0x24] sm:$0xf]
        %v490 = vld [vmem:[%s1 + $0x28] sm:$0xf]
        %v491 = vld [vmem:[%s1 + $0x2c] sm:$0xf]
        %v492 = vld [vmem:[%s1 + $0x30] sm:$0xf]
        %v493 = vld [vmem:[%s1 + $0x34] sm:$0xf]
        %v494 = vld [vmem:[%s1 + $0x38] sm:$0xf]
        %v495 = vld [vmem:[%s1 + $0x3c] sm:$0xf]
        %v496 = vld [vmem:[%s2] sm:$0x1]
        %v497 = vpack.c.bf16 %v465, %v464
        %v498 = vpack.c.bf16 %v467, %v466
        %v499 = vpack.c.bf16 %v469, %v468
        %v500 = vpack.c.bf16 %v471, %v470
        %v501 = vpack.c.bf16 %v473, %v472
        %v502 = vpack.c.bf16 %v475, %v474
        %v503 = vpack.c.bf16 %v477, %v476
        %v504 = vpack.c.bf16 %v479, %v478
        %v506 = vperm.slane %v496, 0
        %v524 = vunpack.c.l.b16 %v480
        %v525 = vunpack.c.l.b16 %v481
        %v526 = vunpack.c.l.b16 %v482
        %v527 = vunpack.c.l.b16 %v483
        %v528 = vunpack.c.l.b16 %v484
        %v529 = vunpack.c.l.b16 %v485
        %v530 = vunpack.c.l.b16 %v486
        %v531 = vunpack.c.l.b16 %v487
        %v532 = vunpack.c.l.b16 %v488
        %v533 = vunpack.c.l.b16 %v489
        %v534 = vunpack.c.l.b16 %v490
        %v535 = vunpack.c.l.b16 %v491
        %v536 = vunpack.c.l.b16 %v492
        %v537 = vunpack.c.l.b16 %v493
        %v538 = vunpack.c.l.b16 %v494
        %v539 = vunpack.c.l.b16 %v495
        %v540 = vpack.c.b16 %v525, %v524
        %v541 = vpack.c.b16 %v527, %v526
        %v542 = vpack.c.b16 %v529, %v528
        %v543 = vpack.c.b16 %v531, %v530
        %v544 = vpack.c.b16 %v533, %v532
        %v545 = vpack.c.b16 %v535, %v534
        %v546 = vpack.c.b16 %v537, %v536
        %v547 = vpack.c.b16 %v539, %v538
        %556 = vmatpush.bf16.msra.mxu0 %v547
        %557 = vmatpush.bf16.msra.mxu0 %v546
        %558 = vmatpush.bf16.msra.mxu0 %v545
        %559 = vmatpush.bf16.msra.mxu0 %v544
        %560 = vmatpush.bf16.msra.mxu0 %v543
        %561 = vmatpush.bf16.msra.mxu0 %v542
        %562 = vmatpush.bf16.msra.mxu0 %v541
        %563 = vmatpush.bf16.msra.mxu0 %v540
        %564 = vmatmul.bf16.gmra.mxu0 %v497
        %v565 = vpop.f32.mrf.mxu0
        %v566 = vadd.f32 %v506, %v565
        %v567 = vpop.f32.mrf.mxu0
        %v568 = vadd.f32 %v506, %v567
        %569 = vmatmul.bf16.gmra.mxu0 %v498
        %v570 = vpop.f32.mrf.mxu0
        %v571 = vadd.f32 %v506, %v570
        %v572 = vpop.f32.mrf.mxu0
        %v573 = vadd.f32 %v506, %v572
        %574 = vmatmul.bf16.gmra.mxu0 %v499
        %v575 = vpop.f32.mrf.mxu0
        %v576 = vadd.f32 %v506, %v575
        %v577 = vpop.f32.mrf.mxu0
        %v578 = vadd.f32 %v506, %v577
        %579 = vmatmul.bf16.gmra.mxu0 %v500
        %v580 = vpop.f32.mrf.mxu0
        %v581 = vadd.f32 %v506, %v580
        %v582 = vpop.f32.mrf.mxu0
        %v583 = vadd.f32 %v506, %v582
        %584 = vmatmul.bf16.gmra.mxu0 %v501
        %v585 = vpop.f32.mrf.mxu0
        %v586 = vadd.f32 %v506, %v585
        %v587 = vpop.f32.mrf.mxu0
        %v588 = vadd.f32 %v506, %v587
        %589 = vmatmul.bf16.gmra.mxu0 %v502
        %v590 = vpop.f32.mrf.mxu0
        %v591 = vadd.f32 %v506, %v590
        %v592 = vpop.f32.mrf.mxu0
        %v593 = vadd.f32 %v506, %v592
        %594 = vmatmul.bf16.gmra.mxu0 %v503
        %v595 = vpop.f32.mrf.mxu0
        %v596 = vadd.f32 %v506, %v595
        %v597 = vpop.f32.mrf.mxu0
        %v598 = vadd.f32 %v506, %v597
        %599 = vmatmul.bf16.gmra.mxu0 %v504
        %v600 = vpop.f32.mrf.mxu0
        %v601 = vadd.f32 %v506, %v600
        %v602 = vpop.f32.mrf.mxu0
        %v603 = vadd.f32 %v506, %v602
        %604 = vdwg.mxu0
        %v605 = vmax.f32 %v566, 0.0
        %v606 = vmax.f32 %v568, 0.0
        %v607 = vmax.f32 %v571, 0.0
        %v608 = vmax.f32 %v573, 0.0
        %v609 = vmax.f32 %v576, 0.0
        %v610 = vmax.f32 %v578, 0.0
        %v611 = vmax.f32 %v581, 0.0
        %v612 = vmax.f32 %v583, 0.0
        %v613 = vmax.f32 %v586, 0.0
        %v614 = vmax.f32 %v588, 0.0
        %v615 = vmax.f32 %v591, 0.0
        %v616 = vmax.f32 %v593, 0.0
        %v617 = vmax.f32 %v596, 0.0
        %v618 = vmax.f32 %v598, 0.0
        %v619 = vmax.f32 %v601, 0.0
        %v620 = vmax.f32 %v603, 0.0
        %v621 = vld [vmem:[%s3] sm:$0xf]
        %v622 = vld [vmem:[%s3 + $0x4] sm:$0xf]
        %v623 = vld [vmem:[%s3 + $0x8] sm:$0xf]
        %v624 = vld [vmem:[%s3 + $0xc] sm:$0xf]
        %v625 = vld [vmem:[%s3 + $0x10] sm:$0xf]
        %v626 = vld [vmem:[%s3 + $0x14] sm:$0xf]
        %v627 = vld [vmem:[%s3 + $0x18] sm:$0xf]
        %v628 = vld [vmem:[%s3 + $0x1c] sm:$0xf]
        %v629 = vld [vmem:[%s4] sm:$0x1]
        %v630 = vpack.c.bf16 %v606, %v605
        %v631 = vpack.c.bf16 %v608, %v607
        %v632 = vpack.c.bf16 %v610, %v609
        %v633 = vpack.c.bf16 %v612, %v611
        %v634 = vpack.c.bf16 %v614, %v613
        %v635 = vpack.c.bf16 %v616, %v615
        %v636 = vpack.c.bf16 %v618, %v617
        %v637 = vpack.c.bf16 %v620, %v619
        %v639 = vperm.slane %v629, 0
        %v649 = vunpack.c.l.b16 %v621
        %v650 = vunpack.c.l.b16 %v622
        %v651 = vunpack.c.l.b16 %v623
        %v652 = vunpack.c.l.b16 %v624
        %v653 = vunpack.c.l.b16 %v625
        %v654 = vunpack.c.l.b16 %v626
        %v655 = vunpack.c.l.b16 %v627
        %v656 = vunpack.c.l.b16 %v628
        %v657 = vpack.c.b16 %v650, %v649
        %v658 = vpack.c.b16 %v652, %v651
        %v659 = vpack.c.b16 %v654, %v653
        %v660 = vpack.c.b16 %v656, %v655
        %vm665 = vcmask 523264
        %v667 = vsel %vm665, %v630, 0
        %v670 = vsel %vm665, %v631, 0
        %v673 = vsel %vm665, %v632, 0
        %v676 = vsel %vm665, %v633, 0
        %v679 = vsel %vm665, %v634, 0
        %v682 = vsel %vm665, %v635, 0
        %v685 = vsel %vm665, %v636, 0
        %v688 = vsel %vm665, %v637, 0
        %690 = vmatpush.bf16.msra.mxu0 0
        %691 = vmatpush.bf16.msra.mxu0 0
        %692 = vmatpush.bf16.msra.mxu0 0
        %693 = vmatpush.bf16.msra.mxu0 0
        %694 = vmatpush.bf16.msra.mxu0 %v660
        %695 = vmatpush.bf16.msra.mxu0 %v659
        %696 = vmatpush.bf16.msra.mxu0 %v658
        %697 = vmatpush.bf16.msra.mxu0 %v657
        %698 = vmatmul.bf16.gmra.mxu0 %v667
        %v699 = vpop.f32.mrf.mxu0
        %v700 = vadd.f32 %v639, %v699
        %v701 = vpop.f32.mrf.mxu0
        %v702 = vadd.f32 %v639, %v701
        %703 = vmatmul.bf16.gmra.mxu0 %v670
        %v704 = vpop.f32.mrf.mxu0
        %v705 = vadd.f32 %v639, %v704
        %v706 = vpop.f32.mrf.mxu0
        %v707 = vadd.f32 %v639, %v706
        %708 = vmatmul.bf16.gmra.mxu0 %v673
        %v709 = vpop.f32.mrf.mxu0
        %v710 = vadd.f32 %v639, %v709
        %v711 = vpop.f32.mrf.mxu0
        %v712 = vadd.f32 %v639, %v711
        %713 = vmatmul.bf16.gmra.mxu0 %v676
        %v714 = vpop.f32.mrf.mxu0
        %v715 = vadd.f32 %v639, %v714
        %v716 = vpop.f32.mrf.mxu0
        %v717 = vadd.f32 %v639, %v716
        %718 = vmatmul.bf16.gmra.mxu0 %v679
        %v719 = vpop.f32.mrf.mxu0
        %v720 = vadd.f32 %v639, %v719
        %v721 = vpop.f32.mrf.mxu0
        %v722 = vadd.f32 %v639, %v721
        %723 = vmatmul.bf16.gmra.mxu0 %v682
        %v724 = vpop.f32.mrf.mxu0
        %v725 = vadd.f32 %v639, %v724
        %v726 = vpop.f32.mrf.mxu0
        %v727 = vadd.f32 %v639, %v726
        %728 = vmatmul.bf16.gmra.mxu0 %v685
        %v729 = vpop.f32.mrf.mxu0
        %v730 = vadd.f32 %v639, %v729
        %v731 = vpop.f32.mrf.mxu0
        %v732 = vadd.f32 %v639, %v731
        %733 = vmatmul.bf16.gmra.mxu0 %v688
        %v734 = vpop.f32.mrf.mxu0
        %v735 = vadd.f32 %v639, %v734
        %v736 = vpop.f32.mrf.mxu0
        %v737 = vadd.f32 %v639, %v736
        %738 = vdwg.mxu0
        %v739 = vmax.f32 %v700, 0.0
        %v740 = vmax.f32 %v702, 0.0
        %v741 = vmax.f32 %v705, 0.0
        %v742 = vmax.f32 %v707, 0.0
        %v743 = vmax.f32 %v710, 0.0
        %v744 = vmax.f32 %v712, 0.0
        %v745 = vmax.f32 %v715, 0.0
        %v746 = vmax.f32 %v717, 0.0
        %v747 = vmax.f32 %v720, 0.0
        %v748 = vmax.f32 %v722, 0.0
        %v749 = vmax.f32 %v725, 0.0
        %v750 = vmax.f32 %v727, 0.0
        %v751 = vmax.f32 %v730, 0.0
        %v752 = vmax.f32 %v732, 0.0
        %v753 = vmax.f32 %v735, 0.0
        %v754 = vmax.f32 %v737, 0.0
        %v755 = vld [vmem:[%s5] sm:$0xf]
        %v756 = vld [vmem:[%s5 + $0x4] sm:$0xf]
        %v757 = vld [vmem:[%s5 + $0x8] sm:$0xf]
        %v758 = vld [vmem:[%s5 + $0xc] sm:$0xf]
        %v759 = vld [vmem:[%s6] sm:$0x1]
        %v760 = vpack.c.bf16 %v740, %v739
        %v761 = vpack.c.bf16 %v742, %v741
        %v762 = vpack.c.bf16 %v744, %v743
        %v763 = vpack.c.bf16 %v746, %v745
        %v764 = vpack.c.bf16 %v748, %v747
        %v765 = vpack.c.bf16 %v750, %v749
        %v766 = vpack.c.bf16 %v752, %v751
        %v767 = vpack.c.bf16 %v754, %v753
        %v769 = vperm.slane %v759, 0
        %v775 = vunpack.c.l.b16 %v755
        %v776 = vunpack.c.l.b16 %v756
        %v777 = vunpack.c.l.b16 %v757
        %v778 = vunpack.c.l.b16 %v758
        %v779 = vpack.c.b16 %v776, %v775
        %v780 = vpack.c.b16 %v778, %v777
        %vm783 = vcmask 261120
        %v785 = vsel %vm783, %v760, 0
        %v788 = vsel %vm783, %v761, 0
        %v791 = vsel %vm783, %v762, 0
        %v794 = vsel %vm783, %v763, 0
        %v797 = vsel %vm783, %v764, 0
        %v800 = vsel %vm783, %v765, 0
        %v803 = vsel %vm783, %v766, 0
        %v806 = vsel %vm783, %v767, 0
        %808 = vmatpush.bf16.msra.mxu0 0
        %809 = vmatpush.bf16.msra.mxu0 0
        %810 = vmatpush.bf16.msra.mxu0 0
        %811 = vmatpush.bf16.msra.mxu0 0
        %812 = vmatpush.bf16.msra.mxu0 0
        %813 = vmatpush.bf16.msra.mxu0 0
        %814 = vmatpush.bf16.msra.mxu0 %v780
        %815 = vmatpush.bf16.msra.mxu0 %v779
        %816 = vmatmul.bf16.gmra.mxu0 %v785
        %v817 = vpop.f32.mrf.mxu0
        %v818 = vadd.f32 %v769, %v817
        %v819 = vpop.f32.mrf.mxu0
        %v820 = vadd.f32 %v769, %v819
        %821 = vmatmul.bf16.gmra.mxu0 %v788
        %v822 = vpop.f32.mrf.mxu0
        %v823 = vadd.f32 %v769, %v822
        %v824 = vpop.f32.mrf.mxu0
        %v825 = vadd.f32 %v769, %v824
        %826 = vmatmul.bf16.gmra.mxu0 %v791
        %v827 = vpop.f32.mrf.mxu0
        %v828 = vadd.f32 %v769, %v827
        %v829 = vpop.f32.mrf.mxu0
        %v830 = vadd.f32 %v769, %v829
        %831 = vmatmul.bf16.gmra.mxu0 %v794
        %v832 = vpop.f32.mrf.mxu0
        %v833 = vadd.f32 %v769, %v832
        %v834 = vpop.f32.mrf.mxu0
        %v835 = vadd.f32 %v769, %v834
        %836 = vmatmul.bf16.gmra.mxu0 %v797
        %v837 = vpop.f32.mrf.mxu0
        %v838 = vadd.f32 %v769, %v837
        %v839 = vpop.f32.mrf.mxu0
        %v840 = vadd.f32 %v769, %v839
        %841 = vmatmul.bf16.gmra.mxu0 %v800
        %v842 = vpop.f32.mrf.mxu0
        %v843 = vadd.f32 %v769, %v842
        %v844 = vpop.f32.mrf.mxu0
        %v845 = vadd.f32 %v769, %v844
        %846 = vmatmul.bf16.gmra.mxu0 %v803
        %v847 = vpop.f32.mrf.mxu0
        %v848 = vadd.f32 %v769, %v847
        %v849 = vpop.f32.mrf.mxu0
        %v850 = vadd.f32 %v769, %v849
        %851 = vmatmul.bf16.gmra.mxu0 %v806
        %v852 = vpop.f32.mrf.mxu0
        %v853 = vadd.f32 %v769, %v852
        %v854 = vpop.f32.mrf.mxu0
        %v855 = vadd.f32 %v769, %v854
        %856 = vdwg.mxu0
        %v857 = vld [vmem:[%s7] sm:$0xf]
        %v858 = vld [vmem:[%s7 + $0x4] sm:$0xf]
        %v859 = vld [vmem:[%s8] sm:$0x1]
        %v860 = vpack.c.bf16 %v820, %v818
        %v861 = vpack.c.bf16 %v825, %v823
        %v862 = vpack.c.bf16 %v830, %v828
        %v863 = vpack.c.bf16 %v835, %v833
        %v864 = vpack.c.bf16 %v840, %v838
        %v865 = vpack.c.bf16 %v845, %v843
        %v866 = vpack.c.bf16 %v850, %v848
        %v867 = vpack.c.bf16 %v855, %v853
        %v869 = vperm.slane %v859, 0
        %v873 = vunpack.c.l.b16 %v857
        %v874 = vunpack.c.l.b16 %v858
        %v875 = vpack.c.b16 %v874, %v873
        %vm877 = vcmask 130048
        %v879 = vsel %vm877, %v860, 0
        %v882 = vsel %vm877, %v861, 0
        %v885 = vsel %vm877, %v862, 0
        %v888 = vsel %vm877, %v863, 0
        %v891 = vsel %vm877, %v864, 0
        %v894 = vsel %vm877, %v865, 0
        %v897 = vsel %vm877, %v866, 0
        %v900 = vsel %vm877, %v867, 0
        %902 = vmatpush.bf16.msra.mxu0 0
        %903 = vmatpush.bf16.msra.mxu0 0
        %904 = vmatpush.bf16.msra.mxu0 0
        %905 = vmatpush.bf16.msra.mxu0 0
        %906 = vmatpush.bf16.msra.mxu0 0
        %907 = vmatpush.bf16.msra.mxu0 0
        %908 = vmatpush.bf16.msra.mxu0 0
        %909 = vmatpush.bf16.msra.mxu0 %v875
        %910 = vmatmul.bf16.gmra.mxu0 %v879
        %v911 = vpop.f32.mrf.mxu0
        %v912 = vadd.f32 %v869, %v911
        %v913 = vpop.f32.mrf.mxu0
        %v914 = vadd.f32 %v869, %v913
        %915 = vmatmul.bf16.gmra.mxu0 %v882
        %v916 = vpop.f32.mrf.mxu0
        %v917 = vadd.f32 %v869, %v916
        %v918 = vpop.f32.mrf.mxu0
        %v919 = vadd.f32 %v869, %v918
        %920 = vmatmul.bf16.gmra.mxu0 %v885
        %v921 = vpop.f32.mrf.mxu0
        %v922 = vadd.f32 %v869, %v921
        %v923 = vpop.f32.mrf.mxu0
        %v924 = vadd.f32 %v869, %v923
        %925 = vmatmul.bf16.gmra.mxu0 %v888
        %v926 = vpop.f32.mrf.mxu0
        %v927 = vadd.f32 %v869, %v926
        %v928 = vpop.f32.mrf.mxu0
        %v929 = vadd.f32 %v869, %v928
        %930 = vmatmul.bf16.gmra.mxu0 %v891
        %v931 = vpop.f32.mrf.mxu0
        %v932 = vadd.f32 %v869, %v931
        %v933 = vpop.f32.mrf.mxu0
        %v934 = vadd.f32 %v869, %v933
        %935 = vmatmul.bf16.gmra.mxu0 %v894
        %v936 = vpop.f32.mrf.mxu0
        %v937 = vadd.f32 %v869, %v936
        %v938 = vpop.f32.mrf.mxu0
        %v939 = vadd.f32 %v869, %v938
        %940 = vmatmul.bf16.gmra.mxu0 %v897
        %v941 = vpop.f32.mrf.mxu0
        %v942 = vadd.f32 %v869, %v941
        %v943 = vpop.f32.mrf.mxu0
        %v944 = vadd.f32 %v869, %v943
        %945 = vmatmul.bf16.gmra.mxu0 %v900
        %v946 = vpop.f32.mrf.mxu0
        %v947 = vadd.f32 %v869, %v946
        %v948 = vpop.f32.mrf.mxu0
        %v949 = vadd.f32 %v869, %v948
        %950 = vdwg.mxu0
        %v951 = vmax.f32 %v912, 0.0
        %v952 = vmax.f32 %v914, 0.0
        %v953 = vmax.f32 %v917, 0.0
        %v954 = vmax.f32 %v919, 0.0
        %v955 = vmax.f32 %v922, 0.0
        %v956 = vmax.f32 %v924, 0.0
        %v957 = vmax.f32 %v927, 0.0
        %v958 = vmax.f32 %v929, 0.0
        %v959 = vmax.f32 %v932, 0.0
        %v960 = vmax.f32 %v934, 0.0
        %v961 = vmax.f32 %v937, 0.0
        %v962 = vmax.f32 %v939, 0.0
        %v963 = vmax.f32 %v942, 0.0
        %v964 = vmax.f32 %v944, 0.0
        %v965 = vmax.f32 %v947, 0.0
        %v966 = vmax.f32 %v949, 0.0
        %v967 = vld [vmem:[%s9] sm:$0xf]
        %v968 = vld [vmem:[%s9 + $0x4] sm:$0xf]
        %v969 = vld [vmem:[%s9 + $0x8] sm:$0xf]
        %v970 = vld [vmem:[%s9 + $0xc] sm:$0xf]
        %v971 = vld [vmem:[%s10] sm:$0x1]
        %v972 = vpack.c.bf16 %v952, %v951
        %v973 = vpack.c.bf16 %v954, %v953
        %v974 = vpack.c.bf16 %v956, %v955
        %v975 = vpack.c.bf16 %v958, %v957
        %v976 = vpack.c.bf16 %v960, %v959
        %v977 = vpack.c.bf16 %v962, %v961
        %v978 = vpack.c.bf16 %v964, %v963
        %v979 = vpack.c.bf16 %v966, %v965
        %v981 = vperm.slane %v971, 0
        %v987 = vunpack.c.l.b16 %v967
        %v988 = vunpack.c.l.b16 %v968
        %v989 = vunpack.c.l.b16 %v969
        %v990 = vunpack.c.l.b16 %v970
        %v991 = vpack.c.b16 %v988, %v987
        %v992 = vpack.c.b16 %v990, %v989
        %v996 = vsel %vm783, %v972, 0
        %v999 = vsel %vm783, %v973, 0
        %v1002 = vsel %vm783, %v974, 0
        %v1005 = vsel %vm783, %v975, 0
        %v1008 = vsel %vm783, %v976, 0
        %v1011 = vsel %vm783, %v977, 0
        %v1014 = vsel %vm783, %v978, 0
        %v1017 = vsel %vm783, %v979, 0
        %1019 = vmatpush.bf16.msra.mxu0 0
        %1020 = vmatpush.bf16.msra.mxu0 0
        %1021 = vmatpush.bf16.msra.mxu0 0
        %1022 = vmatpush.bf16.msra.mxu0 0
        %1023 = vmatpush.bf16.msra.mxu0 0
        %1024 = vmatpush.bf16.msra.mxu0 0
        %1025 = vmatpush.bf16.msra.mxu0 %v992
        %1026 = vmatpush.bf16.msra.mxu0 %v991
        %1027 = vmatmul.bf16.gmra.mxu0 %v996
        %v1028 = vpop.f32.mrf.mxu0
        %v1029 = vadd.f32 %v981, %v1028
        %v1030 = vpop.f32.mrf.mxu0
        %v1031 = vadd.f32 %v981, %v1030
        %1032 = vmatmul.bf16.gmra.mxu0 %v999
        %v1033 = vpop.f32.mrf.mxu0
        %v1034 = vadd.f32 %v981, %v1033
        %v1035 = vpop.f32.mrf.mxu0
        %v1036 = vadd.f32 %v981, %v1035
        %1037 = vmatmul.bf16.gmra.mxu0 %v1002
        %v1038 = vpop.f32.mrf.mxu0
        %v1039 = vadd.f32 %v981, %v1038
        %v1040 = vpop.f32.mrf.mxu0
        %v1041 = vadd.f32 %v981, %v1040
        %1042 = vmatmul.bf16.gmra.mxu0 %v1005
        %v1043 = vpop.f32.mrf.mxu0
        %v1044 = vadd.f32 %v981, %v1043
        %v1045 = vpop.f32.mrf.mxu0
        %v1046 = vadd.f32 %v981, %v1045
        %1047 = vmatmul.bf16.gmra.mxu0 %v1008
        %v1048 = vpop.f32.mrf.mxu0
        %v1049 = vadd.f32 %v981, %v1048
        %v1050 = vpop.f32.mrf.mxu0
        %v1051 = vadd.f32 %v981, %v1050
        %1052 = vmatmul.bf16.gmra.mxu0 %v1011
        %v1053 = vpop.f32.mrf.mxu0
        %v1054 = vadd.f32 %v981, %v1053
        %v1055 = vpop.f32.mrf.mxu0
        %v1056 = vadd.f32 %v981, %v1055
        %1057 = vmatmul.bf16.gmra.mxu0 %v1014
        %v1058 = vpop.f32.mrf.mxu0
        %v1059 = vadd.f32 %v981, %v1058
        %v1060 = vpop.f32.mrf.mxu0
        %v1061 = vadd.f32 %v981, %v1060
        %1062 = vmatmul.bf16.gmra.mxu0 %v1017
        %v1063 = vpop.f32.mrf.mxu0
        %v1064 = vadd.f32 %v981, %v1063
        %v1065 = vpop.f32.mrf.mxu0
        %v1066 = vadd.f32 %v981, %v1065
        %1067 = vdwg.mxu0
        %v1068 = vmax.f32 %v1029, 0.0
        %v1069 = vmax.f32 %v1031, 0.0
        %v1070 = vmax.f32 %v1034, 0.0
        %v1071 = vmax.f32 %v1036, 0.0
        %v1072 = vmax.f32 %v1039, 0.0
        %v1073 = vmax.f32 %v1041, 0.0
        %v1074 = vmax.f32 %v1044, 0.0
        %v1075 = vmax.f32 %v1046, 0.0
        %v1076 = vmax.f32 %v1049, 0.0
        %v1077 = vmax.f32 %v1051, 0.0
        %v1078 = vmax.f32 %v1054, 0.0
        %v1079 = vmax.f32 %v1056, 0.0
        %v1080 = vmax.f32 %v1059, 0.0
        %v1081 = vmax.f32 %v1061, 0.0
        %v1082 = vmax.f32 %v1064, 0.0
        %v1083 = vmax.f32 %v1066, 0.0
        %v1084 = vld [vmem:[%s11] sm:$0xf]
        %v1085 = vld [vmem:[%s11 + $0x4] sm:$0xf]
        %v1086 = vld [vmem:[%s11 + $0x8] sm:$0xf]
        %v1087 = vld [vmem:[%s11 + $0xc] sm:$0xf]
        %v1088 = vld [vmem:[%s11 + $0x10] sm:$0xf]
        %v1089 = vld [vmem:[%s11 + $0x14] sm:$0xf]
        %v1090 = vld [vmem:[%s11 + $0x18] sm:$0xf]
        %v1091 = vld [vmem:[%s11 + $0x1c] sm:$0xf]
        %v1092 = vld [vmem:[%s12] sm:$0x1]
        %v1093 = vpack.c.bf16 %v1069, %v1068
        %v1094 = vpack.c.bf16 %v1071, %v1070
        %v1095 = vpack.c.bf16 %v1073, %v1072
        %v1096 = vpack.c.bf16 %v1075, %v1074
        %v1097 = vpack.c.bf16 %v1077, %v1076
        %v1098 = vpack.c.bf16 %v1079, %v1078
        %v1099 = vpack.c.bf16 %v1081, %v1080
        %v1100 = vpack.c.bf16 %v1083, %v1082
        %v1102 = vperm.slane %v1092, 0
        %v1112 = vunpack.c.l.b16 %v1084
        %v1113 = vunpack.c.l.b16 %v1085
        %v1114 = vunpack.c.l.b16 %v1086
        %v1115 = vunpack.c.l.b16 %v1087
        %v1116 = vunpack.c.l.b16 %v1088
        %v1117 = vunpack.c.l.b16 %v1089
        %v1118 = vunpack.c.l.b16 %v1090
        %v1119 = vunpack.c.l.b16 %v1091
        %v1120 = vpack.c.b16 %v1113, %v1112
        %v1121 = vpack.c.b16 %v1115, %v1114
        %v1122 = vpack.c.b16 %v1117, %v1116
        %v1123 = vpack.c.b16 %v1119, %v1118
        %v1129 = vsel %vm665, %v1093, 0
        %v1132 = vsel %vm665, %v1094, 0
        %v1135 = vsel %vm665, %v1095, 0
        %v1138 = vsel %vm665, %v1096, 0
        %v1141 = vsel %vm665, %v1097, 0
        %v1144 = vsel %vm665, %v1098, 0
        %v1147 = vsel %vm665, %v1099, 0
        %v1150 = vsel %vm665, %v1100, 0
        %1152 = vmatpush.bf16.msra.mxu0 0
        %1153 = vmatpush.bf16.msra.mxu0 0
        %1154 = vmatpush.bf16.msra.mxu0 0
        %1155 = vmatpush.bf16.msra.mxu0 0
        %1156 = vmatpush.bf16.msra.mxu0 %v1123
        %1157 = vmatpush.bf16.msra.mxu0 %v1122
        %1158 = vmatpush.bf16.msra.mxu0 %v1121
        %1159 = vmatpush.bf16.msra.mxu0 %v1120
        %1160 = vmatmul.bf16.gmra.mxu0 %v1129
        %v1161 = vpop.f32.mrf.mxu0
        %v1162 = vadd.f32 %v1102, %v1161
        %v1163 = vpop.f32.mrf.mxu0
        %v1164 = vadd.f32 %v1102, %v1163
        %1165 = vmatmul.bf16.gmra.mxu0 %v1132
        %v1166 = vpop.f32.mrf.mxu0
        %v1167 = vadd.f32 %v1102, %v1166
        %v1168 = vpop.f32.mrf.mxu0
        %v1169 = vadd.f32 %v1102, %v1168
        %1170 = vmatmul.bf16.gmra.mxu0 %v1135
        %v1171 = vpop.f32.mrf.mxu0
        %v1172 = vadd.f32 %v1102, %v1171
        %v1173 = vpop.f32.mrf.mxu0
        %v1174 = vadd.f32 %v1102, %v1173
        %1175 = vmatmul.bf16.gmra.mxu0 %v1138
        %v1176 = vpop.f32.mrf.mxu0
        %v1177 = vadd.f32 %v1102, %v1176
        %v1178 = vpop.f32.mrf.mxu0
        %v1179 = vadd.f32 %v1102, %v1178
        %1180 = vmatmul.bf16.gmra.mxu0 %v1141
        %v1181 = vpop.f32.mrf.mxu0
        %v1182 = vadd.f32 %v1102, %v1181
        %v1183 = vpop.f32.mrf.mxu0
        %v1184 = vadd.f32 %v1102, %v1183
        %1185 = vmatmul.bf16.gmra.mxu0 %v1144
        %v1186 = vpop.f32.mrf.mxu0
        %v1187 = vadd.f32 %v1102, %v1186
        %v1188 = vpop.f32.mrf.mxu0
        %v1189 = vadd.f32 %v1102, %v1188
        %1190 = vmatmul.bf16.gmra.mxu0 %v1147
        %v1191 = vpop.f32.mrf.mxu0
        %v1192 = vadd.f32 %v1102, %v1191
        %v1193 = vpop.f32.mrf.mxu0
        %v1194 = vadd.f32 %v1102, %v1193
        %1195 = vmatmul.bf16.gmra.mxu0 %v1150
        %v1196 = vpop.f32.mrf.mxu0
        %v1197 = vadd.f32 %v1102, %v1196
        %v1198 = vpop.f32.mrf.mxu0
        %v1199 = vadd.f32 %v1102, %v1198
        %1200 = vdwg.mxu0
        %v1201 = vsub.f32 0.0, %v1162
        %v1202 = vsub.f32 0.0, %v1164
        %v1203 = vsub.f32 0.0, %v1167
        %v1204 = vsub.f32 0.0, %v1169
        %v1205 = vsub.f32 0.0, %v1172
        %v1206 = vsub.f32 0.0, %v1174
        %v1207 = vsub.f32 0.0, %v1177
        %v1208 = vsub.f32 0.0, %v1179
        %v1209 = vsub.f32 0.0, %v1182
        %v1210 = vsub.f32 0.0, %v1184
        %v1211 = vsub.f32 0.0, %v1187
        %v1212 = vsub.f32 0.0, %v1189
        %v1213 = vsub.f32 0.0, %v1192
        %v1214 = vsub.f32 0.0, %v1194
        %v1215 = vsub.f32 0.0, %v1197
        %v1216 = vsub.f32 0.0, %v1199
        %v1217 = vmul.f32 %v1201, 1.442695
        %v1218 = vpow.pop %v1217
        %v1219 = vmul.f32 %v1202, 1.442695
        %v1220 = vpow.pop %v1219
        %v1221 = vmul.f32 %v1203, 1.442695
        %v1222 = vpow.pop %v1221
        %v1223 = vmul.f32 %v1204, 1.442695
        %v1224 = vpow.pop %v1223
        %v1225 = vmul.f32 %v1205, 1.442695
        %v1226 = vpow.pop %v1225
        %v1227 = vmul.f32 %v1206, 1.442695
        %v1228 = vpow.pop %v1227
        %v1229 = vmul.f32 %v1207, 1.442695
        %v1230 = vpow.pop %v1229
        %v1231 = vmul.f32 %v1208, 1.442695
        %v1232 = vpow.pop %v1231
        %v1233 = vmul.f32 %v1209, 1.442695
        %v1234 = vpow.pop %v1233
        %v1235 = vmul.f32 %v1210, 1.442695
        %v1236 = vpow.pop %v1235
        %v1237 = vmul.f32 %v1211, 1.442695
        %v1238 = vpow.pop %v1237
        %v1239 = vmul.f32 %v1212, 1.442695
        %v1240 = vpow.pop %v1239
        %v1241 = vmul.f32 %v1213, 1.442695
        %v1242 = vpow.pop %v1241
        %v1243 = vmul.f32 %v1214, 1.442695
        %v1244 = vpow.pop %v1243
        %v1245 = vmul.f32 %v1215, 1.442695
        %v1246 = vpow.pop %v1245
        %v1247 = vmul.f32 %v1216, 1.442695
        %v1248 = vpow.pop %v1247
        %v1249 = vadd.f32 %v1218, 1.0
        %v1250 = vadd.f32 %v1220, 1.0
        %v1251 = vadd.f32 %v1222, 1.0
        %v1252 = vadd.f32 %v1224, 1.0
        %v1253 = vadd.f32 %v1226, 1.0
        %v1254 = vadd.f32 %v1228, 1.0
        %v1255 = vadd.f32 %v1230, 1.0
        %v1256 = vadd.f32 %v1232, 1.0
        %v1257 = vadd.f32 %v1234, 1.0
        %v1258 = vadd.f32 %v1236, 1.0
        %v1259 = vadd.f32 %v1238, 1.0
        %v1260 = vadd.f32 %v1240, 1.0
        %v1261 = vadd.f32 %v1242, 1.0
        %v1262 = vadd.f32 %v1244, 1.0
        %v1263 = vadd.f32 %v1246, 1.0
        %v1264 = vadd.f32 %v1248, 1.0
        %v1265 = vrcp.pop %v1249
        %v1266 = vrcp.pop %v1250
        %v1267 = vrcp.pop %v1251
        %v1268 = vrcp.pop %v1252
        %v1269 = vrcp.pop %v1253
        %v1270 = vrcp.pop %v1254
        %v1271 = vrcp.pop %v1255
        %v1272 = vrcp.pop %v1256
        %v1273 = vrcp.pop %v1257
        %v1274 = vrcp.pop %v1258
        %v1275 = vrcp.pop %v1259
        %v1276 = vrcp.pop %v1260
        %v1277 = vrcp.pop %v1261
        %v1278 = vrcp.pop %v1262
        %v1279 = vrcp.pop %v1263
        %v1280 = vrcp.pop %v1264
        %1281 = vst [vmem:[%s460] sm:$0xff] %v1265
        %1282 = vst [vmem:[%s460 + $0x8] sm:$0xff] %v1266
        %1283 = vst [vmem:[%s460 + $0x10] sm:$0xff] %v1267
        %1284 = vst [vmem:[%s460 + $0x18] sm:$0xff] %v1268
        %1285 = vst [vmem:[%s460 + $0x20] sm:$0xff] %v1269
        %1286 = vst [vmem:[%s460 + $0x28] sm:$0xff] %v1270
        %1287 = vst [vmem:[%s460 + $0x30] sm:$0xff] %v1271
        %1288 = vst [vmem:[%s460 + $0x38] sm:$0xff] %v1272
        %1289 = vst [vmem:[%s460 + $0x40] sm:$0xff] %v1273
        %1290 = vst [vmem:[%s460 + $0x48] sm:$0xff] %v1274
        %1291 = vst [vmem:[%s460 + $0x50] sm:$0xff] %v1275
        %1292 = vst [vmem:[%s460 + $0x58] sm:$0xff] %v1276
        %1293 = vst [vmem:[%s460 + $0x60] sm:$0xff] %v1277
        %1294 = vst [vmem:[%s460 + $0x68] sm:$0xff] %v1278
        %1295 = vst [vmem:[%s460 + $0x70] sm:$0xff] %v1279
        %1296 = vst [vmem:[%s460 + $0x78] sm:$0xff] %v1280
        %s1297 = sand.u32 %s316, 1
        %s1298 = scalar_lea.sflag [#allocation4], %s1297
        %s1299 = sand.u32 %s316, 1
        %s1300 = smul.addr %s1299, 128
        %s1301 = scalar_lea.vmem [#allocation5], %s1300
        // Predicated region
        $region77: #{autoencoder_forward.1} parent=71 // pred_check
          %p1302 = pneg %p326
        $region78: #{autoencoder_forward.1} parent=71 // pred_check_branch
          %1304 = sbr.rel (%p1302) target = $region80
        $region79: #{autoencoder_forward.1} parent=71 // pred_region
          %s1305 = smul.u32 16, %s30
          %1307 = vsyncadd %s1298, 0
          %s1308 = smul.addr %s1305, 8
          %s1309 = scalar_lea.hbm %s13, %s1308
          %s1310 = sshll.u32 %s1301, 4
          %s1311 = int_to_ptr.vmem [resolvable:$true] %s1310
          %s1312 = sshll.u32 %s1309, 4
          %s1313 = int_to_ptr.hbm [resolvable:$true] %s1312
          %1318 = dma.vmem_to_hbm [thread:$0]  %s1311, 2048, %s1313, %s1298, 128, 128, 8
        $region80: #{autoencoder_forward.1} parent=71 // pred_fallthru
          _
      $region72: #{autoencoder_forward.1} parent=5 // pred_fallthru
        _
      %p1319 = scmp.le.s32.totalorder 2, %s25
      // Predicated region
      $region81: #{autoencoder_forward.1} parent=5 // pred_check
        %p1320 = pneg %p1319
      $region82: #{autoencoder_forward.1} parent=5 // pred_check_branch
        %1322 = sbr.rel (%p1320) target = $region84
      $region83: #{autoencoder_forward.1} parent=5 // pred_region
        %s1323 = ssub.s32 %s25, 2
        // Predicated region
        $region85: #{autoencoder_forward.1} parent=83 // pred_check
          %p1324 = pneg %p332
        $region86: #{autoencoder_forward.1} parent=83 // pred_check_branch
          %1326 = sbr.rel (%p1324) target = $region88
        $region87: #{autoencoder_forward.1} parent=83 // pred_region
          %s1327 = sand.u32 %s317, 1
          %s1328 = scalar_lea.sflag [#allocation4], %s1327
          %s1329 = sand.u32 %s317, 1
          %s1330 = smul.addr %s1329, 128
          %s1331 = scalar_lea.vmem [#allocation5], %s1330
          %1333 = dma.done %s1328, 2048
        $region88: #{autoencoder_forward.1} parent=83 // pred_fallthru
          _
      $region84: #{autoencoder_forward.1} parent=5 // pred_fallthru
        _
    $region6: #{autoencoder_forward.1} parent=1 // loop_footer
      %s29 = sadd.s32 1, %s25
    $region7: #{autoencoder_forward.1} parent=1 // loop_footer_branch
      %24 = sbr.rel target = $region3
    $region8: #{autoencoder_forward.1} parent=1 // loop_exit
      _
    %1334 = vsyncpa [#allocation3], 1
    %s1335 = scalar_lea.sflag [#allocation3], 1
    %1336 = vsyncpa %s1335, 1
    %1337 = vsyncpa [#allocation4], 1
    %s1338 = scalar_lea.sflag [#allocation4], 1
    %1339 = vsyncpa %s1338, 1

</llo_original>
